<compile_context>
chip_gen: v7x
topology: tpu7x:2x2x1
jax: 0.10.0
libtpu: 0.0.40
codegen_flags: <defaults>
</compile_context>

<pallas_src>
import functools

import jax
import jax.numpy as jnp
from jax.experimental import pallas as pl
from jax.experimental.pallas import tpu as pltpu


def _loss_tile(logits_ref, label_ref, *, lb_pos, lb_neg, ignore_index,
               num_classes, H, tile_h):
    """Smoothed CE for one (1, C, tile_h, W) logits block.

    Returns (loss, valid), both (tile_h, W); loss is already zeroed at ignored
    and out-of-bounds positions. The class loop is unrolled at trace time
    (class counts for this loss are small), keeping every op a plain 2D VPU op.
    """
    lbl = label_ref[0]                                   # (TH, W) int32
    ignore = lbl == ignore_index
    valid = jnp.logical_not(ignore)
    if H % tile_h != 0:
        # Ragged last H-tile: reads past H are undefined -> mask them out.
        hrow = jax.lax.broadcasted_iota(jnp.int32, lbl.shape, 0)
        valid = jnp.logical_and(valid, (pl.program_id(1) * tile_h + hrow) < H)

    # Pass 1: running max over the class axis.
    m = logits_ref[0, 0].astype(jnp.float32)             # (TH, W)
    for c in range(1, num_classes):
        m = jnp.maximum(m, logits_ref[0, c].astype(jnp.float32))

    # Pass 2: sum(z), sum(exp(z)), z[target]  (z = x - max).
    sum_exp = jnp.zeros_like(m)
    sum_z = jnp.zeros_like(m)
    tgt_z = jnp.zeros_like(m)
    for c in range(num_classes):
        zc = logits_ref[0, c].astype(jnp.float32) - m
        sum_exp = sum_exp + jnp.exp(zc)
        sum_z = sum_z + zc
        tgt_z = tgt_z + jnp.where(lbl == c, zc, 0.0)     # ignore_index never matches

    lse = jnp.log(sum_exp)
    #   sum_c logs_c = sum_z - C*lse ;  logs_target = z_target - lse
    loss = -(lb_neg * (sum_z - num_classes * lse)
             + (lb_pos - lb_neg) * (tgt_z - lse))
    loss = jnp.where(valid, loss, 0.0)
    return loss, valid


def _partials_kernel(logits_ref, label_ref, parts_ref, **kw):
    """Per-tile partials: row 0 = sum(loss), row 1 = n_valid (in a (1,2,128) block)."""
    loss, valid = _loss_tile(logits_ref, label_ref, **kw)
    tl = jnp.sum(jnp.sum(loss, axis=1, keepdims=True), axis=0, keepdims=True)  # (1,1)
    tc = jnp.sum(jnp.sum(valid.astype(jnp.float32), axis=1, keepdims=True),
                 axis=0, keepdims=True)                                         # (1,1)
    sel = jax.lax.broadcasted_iota(jnp.int32, (2, 128), 0)
    parts_ref[0] = jnp.where(sel == 0, tl, tc)


def _per_pixel_kernel(logits_ref, label_ref, loss_ref, **kw):
    """Writes the per-pixel loss lane-dense into the (1, tile_h, W) output block."""
    loss, _ = _loss_tile(logits_ref, label_ref, **kw)
    loss_ref[0] = loss


def _round_up(x, m):
    return (x + m - 1) // m * m


def _pick_tile_h(C, H, W, logits_itemsize, vmem_budget_bytes):
    """Largest H-tile (multiple of 8, or full H) whose working set fits the budget."""
    # Per H-row: double-buffered logits+labels blocks plus ~8 f32 2D temporaries.
    per_row = (2 * (C * logits_itemsize + 4) + 8 * 4) * W
    th = (vmem_budget_bytes // max(per_row, 1)) // 8 * 8
    th = max(8, min(th, 4096))
    if th >= H:
        return H      # single tile covering all rows (no 8-alignment needed)
    return th


def label_smooth_softmax_ce(logits, label, *, lb_smooth=0.01, reduction='mean',
                            ignore_index=-100, tile_h=None,
                            vmem_budget_bytes=24 * 1024 * 1024):
    """logits: (N, C, H, W) float, label: (N, H, W) int -> scalar (or (N,H,W) if 'none')."""
    if reduction not in ('mean', 'sum', 'none'):
        raise ValueError(f"unknown reduction: {reduction}")
    N, C, H, W = logits.shape
    if label.dtype != jnp.int32:
        label = label.astype(jnp.int32)
    if tile_h is None:
        tile_h = _pick_tile_h(C, H, W, jnp.dtype(logits.dtype).itemsize,
                              vmem_budget_bytes)
    grid_h = pl.cdiv(H, tile_h)

    lb_pos = 1.0 - lb_smooth
    lb_neg = lb_smooth / C
    kw = dict(lb_pos=lb_pos, lb_neg=lb_neg, ignore_index=ignore_index,
              num_classes=C, H=H, tile_h=tile_h)

    in_specs = [
        pl.BlockSpec((1, C, tile_h, W), lambda n, i: (n, 0, i, 0)),
        pl.BlockSpec((1, tile_h, W), lambda n, i: (n, i, 0)),
    ]
    compiler_params = pltpu.CompilerParams(
        dimension_semantics=("parallel", "parallel"),   # no resident accumulator
        vmem_limit_bytes=48 * 1024 * 1024)

    if reduction == 'none':
        return pl.pallas_call(
            functools.partial(_per_pixel_kernel, **kw),
            out_shape=jax.ShapeDtypeStruct((N, H, W), jnp.float32),
            grid_spec=pltpu.PrefetchScalarGridSpec(
                num_scalar_prefetch=0, grid=(N, grid_h),
                in_specs=in_specs,
                out_specs=pl.BlockSpec((1, tile_h, W), lambda n, i: (n, i, 0)),
            ),
            compiler_params=compiler_params,
        )(logits, label)

    num_tiles = N * grid_h
    parts = pl.pallas_call(
        functools.partial(_partials_kernel, **kw),
        out_shape=jax.ShapeDtypeStruct((num_tiles, 2, 128), jnp.float32),
        grid_spec=pltpu.PrefetchScalarGridSpec(
            num_scalar_prefetch=0, grid=(N, grid_h),
            in_specs=in_specs,
            out_specs=pl.BlockSpec((1, 2, 128),
                                   lambda n, i: (n * grid_h + i, 0, 0)),
        ),
        compiler_params=compiler_params,
    )(logits, label)

    loss_sum = jnp.sum(parts[:, 0, 0])
    # Per-tile counts are exact small integers in f32 -> exact integer reduction.
    n_valid = jnp.sum(parts[:, 1, 0].astype(jnp.int32))
    if reduction == 'sum':
        return loss_sum
    # 'mean': like the PyTorch module, n_valid == 0 yields NaN (kept for parity).
    return loss_sum / n_valid.astype(jnp.float32)


def _reference(logits, label, *, lb_smooth=0.01, reduction='mean', ignore_index=-100):
    """Pure-JAX reference mirroring the PyTorch module."""
    logits = logits.astype(jnp.float32)
    N, C, H, W = logits.shape
    ignore = label == ignore_index
    n_valid = jnp.sum(~ignore)
    lbl = jnp.where(ignore, 0, label)
    lb_pos, lb_neg = 1.0 - lb_smooth, lb_smooth / C
    one_hot = jax.nn.one_hot(lbl, C, axis=1, dtype=jnp.float32)
    lb_one_hot = one_hot * lb_pos + (1.0 - one_hot) * lb_neg
    logs = jax.nn.log_softmax(logits, axis=1)
    loss = -jnp.sum(logs * lb_one_hot, axis=1)
    loss = jnp.where(ignore, 0.0, loss)
    if reduction == 'mean':
        return jnp.sum(loss) / n_valid
    if reduction == 'sum':
        return jnp.sum(loss)
    return loss


if __name__ == "__main__":
    key = jax.random.PRNGKey(0)
    k1, k2, k3 = jax.random.split(key, 3)

    N, C, H, W = 2, 4, 16, 16
    logits = jax.random.normal(k1, (N, C, H, W), dtype=jnp.float32)
    label = jax.random.randint(k2, (N, H, W), 0, C, dtype=jnp.int32)
    # sprinkle some ignore_index entries
    ignore_mask = jax.random.bernoulli(k3, 0.1, (N, H, W))
    label = jnp.where(ignore_mask, -100, label)

    out_mean = jax.block_until_ready(
        label_smooth_softmax_ce(logits, label, lb_smooth=0.01,
                                reduction='mean', ignore_index=-100))
    ref_mean = _reference(logits, label, reduction='mean')
    assert jnp.allclose(out_mean, ref_mean, rtol=1e-5, atol=1e-5), (out_mean, ref_mean)

    out_sum = jax.block_until_ready(
        label_smooth_softmax_ce(logits, label, reduction='sum'))
    ref_sum = _reference(logits, label, reduction='sum')
    assert jnp.allclose(out_sum, ref_sum, rtol=1e-5, atol=1e-5), (out_sum, ref_sum)

    out_none = jax.block_until_ready(
        label_smooth_softmax_ce(logits, label, reduction='none'))
    ref_none = _reference(logits, label, reduction='none')
    assert jnp.allclose(out_none, ref_none, rtol=1e-5, atol=1e-5)

    print("KERNEL_OK")
</pallas_src>

<mosaic_0001>
module attributes {stable_mosaic.version = 11 : i64} {
  func.func @_partials_kernel(%arg0: i32, %arg1: i32, %arg2: memref<1x4x16x16xf32, #tpu.memory_space<vmem>>, %arg3: memref<1x16x16xi32, #tpu.memory_space<vmem>>, %arg4: memref<1x2x128xf32, #tpu.memory_space<vmem>>) attributes {dimension_semantics = [#tpu.dimension_semantics<parallel>, #tpu.dimension_semantics<parallel>], iteration_bounds = array<i64: 2, 1>, scalar_prefetch = 0 : i64, scratch_operands = 0 : i64, tpu.core_type = #tpu.core_type<tc>, window_params = [{transform_indices = @transform_0, window_bounds = array<i64: 1, 4, 16, 16>}, {transform_indices = @transform_1, window_bounds = array<i64: 1, 16, 16>}, {transform_indices = @transform_2, window_bounds = array<i64: 1, 2, 128>}]} {
    %c0 = arith.constant 0 : index
    %c0_0 = arith.constant 0 : index
    %c0_1 = arith.constant 0 : index
    %0 = vector.load %arg3[%c0, %c0_0, %c0_1] : memref<1x16x16xi32, #tpu.memory_space<vmem>>, vector<1x16x16xi32>
    %1 = vector.shape_cast %0 : vector<1x16x16xi32> to vector<16x16xi32>
    %c-100_i32 = arith.constant -100 : i32
    %2 = vector.broadcast %c-100_i32 : i32 to vector<16x16xi32>
    %3 = arith.cmpi eq, %1, %2 : vector<16x16xi32>
    %cst = arith.constant dense<true> : vector<16x16xi1>
    %4 = arith.xori %3, %cst : vector<16x16xi1>
    %c0_2 = arith.constant 0 : index
    %c0_3 = arith.constant 0 : index
    %c0_4 = arith.constant 0 : index
    %c0_5 = arith.constant 0 : index
    %5 = vector.load %arg2[%c0_2, %c0_3, %c0_4, %c0_5] : memref<1x4x16x16xf32, #tpu.memory_space<vmem>>, vector<1x1x16x16xf32>
    %6 = vector.shape_cast %5 : vector<1x1x16x16xf32> to vector<16x16xf32>
    %c0_6 = arith.constant 0 : index
    %c1 = arith.constant 1 : index
    %c0_7 = arith.constant 0 : index
    %c0_8 = arith.constant 0 : index
    %7 = vector.load %arg2[%c0_6, %c1, %c0_7, %c0_8] : memref<1x4x16x16xf32, #tpu.memory_space<vmem>>, vector<1x1x16x16xf32>
    %8 = vector.shape_cast %7 : vector<1x1x16x16xf32> to vector<16x16xf32>
    %9 = arith.maximumf %6, %8 : vector<16x16xf32>
    %c0_9 = arith.constant 0 : index
    %c2 = arith.constant 2 : index
    %c0_10 = arith.constant 0 : index
    %c0_11 = arith.constant 0 : index
    %10 = vector.load %arg2[%c0_9, %c2, %c0_10, %c0_11] : memref<1x4x16x16xf32, #tpu.memory_space<vmem>>, vector<1x1x16x16xf32>
    %11 = vector.shape_cast %10 : vector<1x1x16x16xf32> to vector<16x16xf32>
    %12 = arith.maximumf %9, %11 : vector<16x16xf32>
    %c0_12 = arith.constant 0 : index
    %c3 = arith.constant 3 : index
    %c0_13 = arith.constant 0 : index
    %c0_14 = arith.constant 0 : index
    %13 = vector.load %arg2[%c0_12, %c3, %c0_13, %c0_14] : memref<1x4x16x16xf32, #tpu.memory_space<vmem>>, vector<1x1x16x16xf32>
    %14 = vector.shape_cast %13 : vector<1x1x16x16xf32> to vector<16x16xf32>
    %15 = arith.maximumf %12, %14 : vector<16x16xf32>
    %cst_15 = arith.constant 0.000000e+00 : f32
    %16 = vector.broadcast %cst_15 : f32 to vector<16x16xf32>
    %cst_16 = arith.constant 0.000000e+00 : f32
    %17 = vector.broadcast %cst_16 : f32 to vector<16x16xf32>
    %cst_17 = arith.constant 0.000000e+00 : f32
    %18 = vector.broadcast %cst_17 : f32 to vector<16x16xf32>
    %c0_18 = arith.constant 0 : index
    %c0_19 = arith.constant 0 : index
    %c0_20 = arith.constant 0 : index
    %c0_21 = arith.constant 0 : index
    %19 = vector.load %arg2[%c0_18, %c0_19, %c0_20, %c0_21] : memref<1x4x16x16xf32, #tpu.memory_space<vmem>>, vector<1x1x16x16xf32>
    %20 = vector.shape_cast %19 : vector<1x1x16x16xf32> to vector<16x16xf32>
    %21 = arith.subf %20, %15 : vector<16x16xf32>
    %22 = math.exp %21 : vector<16x16xf32>
    %23 = arith.addf %16, %22 : vector<16x16xf32>
    %24 = arith.addf %17, %21 : vector<16x16xf32>
    %c0_i32 = arith.constant 0 : i32
    %25 = vector.broadcast %c0_i32 : i32 to vector<16x16xi32>
    %26 = arith.cmpi eq, %1, %25 : vector<16x16xi32>
    %cst_22 = arith.constant 0.000000e+00 : f32
    %27 = vector.broadcast %cst_22 : f32 to vector<16x16xf32>
    %28 = arith.select %26, %21, %27 : vector<16x16xi1>, vector<16x16xf32>
    %29 = arith.addf %18, %28 : vector<16x16xf32>
    %c0_23 = arith.constant 0 : index
    %c1_24 = arith.constant 1 : index
    %c0_25 = arith.constant 0 : index
    %c0_26 = arith.constant 0 : index
    %30 = vector.load %arg2[%c0_23, %c1_24, %c0_25, %c0_26] : memref<1x4x16x16xf32, #tpu.memory_space<vmem>>, vector<1x1x16x16xf32>
    %31 = vector.shape_cast %30 : vector<1x1x16x16xf32> to vector<16x16xf32>
    %32 = arith.subf %31, %15 : vector<16x16xf32>
    %33 = math.exp %32 : vector<16x16xf32>
    %34 = arith.addf %23, %33 : vector<16x16xf32>
    %35 = arith.addf %24, %32 : vector<16x16xf32>
    %c1_i32 = arith.constant 1 : i32
    %36 = vector.broadcast %c1_i32 : i32 to vector<16x16xi32>
    %37 = arith.cmpi eq, %1, %36 : vector<16x16xi32>
    %cst_27 = arith.constant 0.000000e+00 : f32
    %38 = vector.broadcast %cst_27 : f32 to vector<16x16xf32>
    %39 = arith.select %37, %32, %38 : vector<16x16xi1>, vector<16x16xf32>
    %40 = arith.addf %29, %39 : vector<16x16xf32>
    %c0_28 = arith.constant 0 : index
    %c2_29 = arith.constant 2 : index
    %c0_30 = arith.constant 0 : index
    %c0_31 = arith.constant 0 : index
    %41 = vector.load %arg2[%c0_28, %c2_29, %c0_30, %c0_31] : memref<1x4x16x16xf32, #tpu.memory_space<vmem>>, vector<1x1x16x16xf32>
    %42 = vector.shape_cast %41 : vector<1x1x16x16xf32> to vector<16x16xf32>
    %43 = arith.subf %42, %15 : vector<16x16xf32>
    %44 = math.exp %43 : vector<16x16xf32>
    %45 = arith.addf %34, %44 : vector<16x16xf32>
    %46 = arith.addf %35, %43 : vector<16x16xf32>
    %c2_i32 = arith.constant 2 : i32
    %47 = vector.broadcast %c2_i32 : i32 to vector<16x16xi32>
    %48 = arith.cmpi eq, %1, %47 : vector<16x16xi32>
    %cst_32 = arith.constant 0.000000e+00 : f32
    %49 = vector.broadcast %cst_32 : f32 to vector<16x16xf32>
    %50 = arith.select %48, %43, %49 : vector<16x16xi1>, vector<16x16xf32>
    %51 = arith.addf %40, %50 : vector<16x16xf32>
    %c0_33 = arith.constant 0 : index
    %c3_34 = arith.constant 3 : index
    %c0_35 = arith.constant 0 : index
    %c0_36 = arith.constant 0 : index
    %52 = vector.load %arg2[%c0_33, %c3_34, %c0_35, %c0_36] : memref<1x4x16x16xf32, #tpu.memory_space<vmem>>, vector<1x1x16x16xf32>
    %53 = vector.shape_cast %52 : vector<1x1x16x16xf32> to vector<16x16xf32>
    %54 = arith.subf %53, %15 : vector<16x16xf32>
    %55 = math.exp %54 : vector<16x16xf32>
    %56 = arith.addf %45, %55 : vector<16x16xf32>
    %57 = arith.addf %46, %54 : vector<16x16xf32>
    %c3_i32 = arith.constant 3 : i32
    %58 = vector.broadcast %c3_i32 : i32 to vector<16x16xi32>
    %59 = arith.cmpi eq, %1, %58 : vector<16x16xi32>
    %cst_37 = arith.constant 0.000000e+00 : f32
    %60 = vector.broadcast %cst_37 : f32 to vector<16x16xf32>
    %61 = arith.select %59, %54, %60 : vector<16x16xi1>, vector<16x16xf32>
    %62 = arith.addf %51, %61 : vector<16x16xf32>
    %63 = math.log %56 : vector<16x16xf32>
    %cst_38 = arith.constant 4.000000e+00 : f32
    %64 = vector.broadcast %cst_38 : f32 to vector<16x16xf32>
    %65 = arith.mulf %64, %63 : vector<16x16xf32>
    %66 = arith.subf %57, %65 : vector<16x16xf32>
    %cst_39 = arith.constant 2.500000e-03 : f32
    %67 = vector.broadcast %cst_39 : f32 to vector<16x16xf32>
    %68 = arith.mulf %67, %66 : vector<16x16xf32>
    %69 = arith.subf %62, %63 : vector<16x16xf32>
    %cst_40 = arith.constant 9.875000e-01 : f32
    %70 = vector.broadcast %cst_40 : f32 to vector<16x16xf32>
    %71 = arith.mulf %70, %69 : vector<16x16xf32>
    %72 = arith.addf %68, %71 : vector<16x16xf32>
    %cst_41 = arith.constant 0.000000e+00 : f32
    %73 = vector.broadcast %cst_41 : f32 to vector<16x16xf32>
    %74 = arith.subf %73, %72 : vector<16x16xf32>
    %cst_42 = arith.constant 0.000000e+00 : f32
    %75 = vector.broadcast %cst_42 : f32 to vector<16x16xf32>
    %76 = arith.select %4, %74, %75 : vector<16x16xi1>, vector<16x16xf32>
    %cst_43 = arith.constant dense<0.000000e+00> : vector<16xf32>
    %77 = vector.multi_reduction <add>, %76, %cst_43 [1] : vector<16x16xf32> to vector<16xf32>
    %78 = vector.shape_cast %77 : vector<16xf32> to vector<16x1xf32>
    %cst_44 = arith.constant dense<0.000000e+00> : vector<1xf32>
    %79 = vector.multi_reduction <add>, %78, %cst_44 [0] : vector<16x1xf32> to vector<1xf32>
    %80 = vector.shape_cast %79 : vector<1xf32> to vector<1x1xf32>
    %81 = arith.extui %4 : vector<16x16xi1> to vector<16x16xi32>
    %82 = arith.sitofp %81 : vector<16x16xi32> to vector<16x16xf32>
    %cst_45 = arith.constant dense<0.000000e+00> : vector<16xf32>
    %83 = vector.multi_reduction <add>, %82, %cst_45 [1] : vector<16x16xf32> to vector<16xf32>
    %84 = vector.shape_cast %83 : vector<16xf32> to vector<16x1xf32>
    %cst_46 = arith.constant dense<0.000000e+00> : vector<1xf32>
    %85 = vector.multi_reduction <add>, %84, %cst_46 [0] : vector<16x1xf32> to vector<1xf32>
    %86 = vector.shape_cast %85 : vector<1xf32> to vector<1x1xf32>
    %87 = tpu.iota {dimensions = array<i32: 0>} : vector<2x128xi32>
    %c0_i32_47 = arith.constant 0 : i32
    %88 = vector.broadcast %c0_i32_47 : i32 to vector<2x128xi32>
    %89 = arith.cmpi eq, %87, %88 : vector<2x128xi32>
    %90 = vector.shape_cast %80 : vector<1x1xf32> to vector<1x1xf32>
    %91 = vector.broadcast %90 : vector<1x1xf32> to vector<2x128xf32>
    %92 = vector.shape_cast %86 : vector<1x1xf32> to vector<1x1xf32>
    %93 = vector.broadcast %92 : vector<1x1xf32> to vector<2x128xf32>
    %94 = arith.select %89, %91, %93 : vector<2x128xi1>, vector<2x128xf32>
    %c0_48 = arith.constant 0 : index
    %c0_49 = arith.constant 0 : index
    %c0_50 = arith.constant 0 : index
    %95 = vector.load %arg4[%c0_48, %c0_49, %c0_50] : memref<1x2x128xf32, #tpu.memory_space<vmem>>, vector<1x2x128xf32>
    %96 = vector.shape_cast %95 : vector<1x2x128xf32> to vector<2x128xf32>
    %97 = vector.shape_cast %94 : vector<2x128xf32> to vector<1x2x128xf32>
    tpu.vector_store %arg4[%c0_48, %c0_49, %c0_50], %97 {strides = array<i32>} : memref<1x2x128xf32, #tpu.memory_space<vmem>>, vector<1x2x128xf32>,
    return
  }
  func.func @transform_0(%arg0: i32, %arg1: i32) -> (i32, i32, i32, i32) {
    %c0_i32 = arith.constant 0 : i32
    %c0_i32_0 = arith.constant 0 : i32
    %c0_i32_1 = arith.constant 0 : i32
    return %arg0, %c0_i32, %arg1, %c0_i32_0 : i32, i32, i32, i32
  }
  func.func @transform_1(%arg0: i32, %arg1: i32) -> (i32, i32, i32) {
    %c0_i32 = arith.constant 0 : i32
    %c0_i32_0 = arith.constant 0 : i32
    return %arg0, %arg1, %c0_i32 : i32, i32, i32
  }
  func.func @transform_2(%arg0: i32, %arg1: i32) -> (i32, i32, i32) {
    %c1_i32 = arith.constant 1 : i32
    %0 = arith.muli %arg0, %c1_i32 : i32
    %1 = arith.addi %0, %arg1 : i32
    %c0_i32 = arith.constant 0 : i32
    %c0_i32_0 = arith.constant 0 : i32
    %c0_i32_1 = arith.constant 0 : i32
    return %1, %c0_i32, %c0_i32_0 : i32, i32, i32
  }
}

</mosaic_0001>

<llo_original>
// kernel: tpu_custom_call.1
$region0: #{tpu_custom_call.1}
  #allocation0 [shape = 'u32[]', space=smem, size = 0x4, offset = 0x4, fixed_abs, tag = 'smem constant byte address 0x4 - core index']
  #allocation1 [shape = 'u32[144,128]{1,0:T(1,128)}', space=vmem, size = 0x12000, scoped, tag = 'internal scratch']
  %s0 = inlined_call_operand.hbm [shape: f32[2,4,16,16], index: 0, kind: input, shape index: {}]
  %s1 = inlined_call_operand.hbm [shape: s32[2,16,16], index: 1, kind: input, shape index: {}]
  %s2 = inlined_call_operand.hbm [shape: f32[2,2,128], index: 2, kind: output, shape index: {}]
  %s3 = sld [smem:[#allocation0]]
  $region49: #{tpu_custom_call.1} parent=0
    _
  %s5 = ssub.s32 1, %s3
  %s6 = scalar_select 0, %s5, %s3
  $region1: #{tpu_custom_call.1} parent=0
    #allocation2 [shape = 'u8[65536]{0}', space=vmem, size = 0x10000, scoped, tag = 'input window, operand 0']
    #allocation3 [shape = 's32[2]{0}', space=sflag, size = 0x8, scoped, tag = 'scoped memory for tpu_custom_call.1']
    #allocation4 [shape = 's32[2]{0}', space=sflag, size = 0x8, scoped, tag = 'scoped memory for tpu_custom_call.1']
    #allocation5 [shape = 'u8[16384]{0}', space=vmem, size = 0x4000, scoped, tag = 'input window, operand 1']
    #allocation6 [shape = 's32[2]{0}', space=sflag, size = 0x8, scoped, tag = 'scoped memory for tpu_custom_call.1']
    #allocation7 [shape = 'u8[2048]{0}', space=vmem, size = 0x800, scoped, tag = 'output window, operand 0']
    %7 = vsyncpa [#allocation3], 0
    %s8 = scalar_lea.sflag [#allocation3], 1
    %9 = vsyncpa %s8, 0
    %10 = vsyncpa [#allocation6], 0
    %s11 = scalar_lea.sflag [#allocation6], 1
    %12 = vsyncpa %s11, 0
    %13 = vsyncpa [#allocation4], 0
    %s14 = scalar_lea.sflag [#allocation4], 1
    %15 = vsyncpa %s14, 0
    loop: start=0, step=1, limit=4
    $region2: #{tpu_custom_call.1} parent=1 // loop_pre_header
      _
    $region3: #{tpu_custom_call.1} parent=1 // loop_header
      %s17 = sphi 0, %s21
      %p18 = scmp.ge.s32.totalorder %s17, 4
      %s24 = sphi 0, %s36
      %s25 = sphi 0, %s32
      %s26 = sphi 0, %s24
      %s27 = sphi 0, %s25
      %s28 = sphi 0, %s26
      %s29 = sphi 0, %s27
      %s41 = sphi 0, %s43
      %s44 = sphi 0, %s41
      %s45 = sphi 0, %s44
      %s61 = sphi 0, %s45
      %s69 = sphi 0, %s71
      %s72 = sphi 0, %s69
      %s73 = sphi 0, %s72
      %s89 = sphi 0, %s73
      %s97 = sphi 0, %s99
      %s100 = sphi 0, %s97
      %s101 = sphi 0, %s100
      %s117 = sphi 0, %s101
    $region4: #{tpu_custom_call.1} parent=1 // loop_header_branch
      %20 = sbr.rel (%p18) target = $region8
    $region5: #{tpu_custom_call.1} parent=1 // loop_body
      %s22 = ssub.s32 %s17, 1
      %s23 = ssub.s32 %s17, 2
      %s30 = sadd.s32 1, %s25
      %p31 = scmp.ge.s32.totalorder %s30, 1
      %s32 = scalar_select %p31, 0, %s30
      %s33 = sadd.s32 1, %s24
      %s34 = scalar_select %p31, %s33, %s24
      %p35 = scmp.ge.s32.totalorder %s34, 2
      %s36 = scalar_select %p35, 0, %s34
      %s37 = ssub.s32 %s24, %s36
      %s38 = ssub.s32 %s25, %s32
      %s39 = sor.u32 %s37, %s38
      %p40 = scmp.eq.s32.totalorder %s39, 0
      %s42 = sadd.s32 %s41, 1
      %s43 = scalar_select %p40, %s41, %s42
      %p46 = pneg %p40
      %p47 = scmp.eq.s32.totalorder %s17, 1
      %p48 = por %p46, %p47
      %p49 = scmp.ne.s32.totalorder %s41, %s44
      %p50 = scmp.eq.s32.totalorder %s17, 0
      %p51 = por %p49, %p50
      %p52 = scmp.ne.s32.totalorder %s41, %s44
      %p53 = scmp.eq.s32.totalorder %s22, 1
      %p54 = por %p52, %p53
      %p55 = scmp.ne.s32.totalorder %s44, %s45
      %p56 = scmp.eq.s32.totalorder %s22, 0
      %p57 = por %p55, %p56
      %p58 = scmp.ne.s32.totalorder %s44, %s45
      %p59 = scmp.eq.s32.totalorder %s23, 1
      %p60 = por %p58, %p59
      %p62 = scmp.ne.s32.totalorder %s45, %s61
      %p63 = scmp.eq.s32.totalorder %s23, 0
      %p64 = por %p62, %p63
      %s65 = ssub.s32 %s24, %s36
      %s66 = ssub.s32 %s25, %s32
      %s67 = sor.u32 %s65, %s66
      %p68 = scmp.eq.s32.totalorder %s67, 0
      %s70 = sadd.s32 %s69, 1
      %s71 = scalar_select %p68, %s69, %s70
      %p74 = pneg %p68
      %p75 = scmp.eq.s32.totalorder %s17, 1
      %p76 = por %p74, %p75
      %p77 = scmp.ne.s32.totalorder %s69, %s72
      %p78 = scmp.eq.s32.totalorder %s17, 0
      %p79 = por %p77, %p78
      %p80 = scmp.ne.s32.totalorder %s69, %s72
      %p81 = scmp.eq.s32.totalorder %s22, 1
      %p82 = por %p80, %p81
      %p83 = scmp.ne.s32.totalorder %s72, %s73
      %p84 = scmp.eq.s32.totalorder %s22, 0
      %p85 = por %p83, %p84
      %p86 = scmp.ne.s32.totalorder %s72, %s73
      %p87 = scmp.eq.s32.totalorder %s23, 1
      %p88 = por %p86, %p87
      %p90 = scmp.ne.s32.totalorder %s73, %s89
      %p91 = scmp.eq.s32.totalorder %s23, 0
      %p92 = por %p90, %p91
      %s93 = sadd.s32 %s24, %s25
      %s94 = sadd.s32 %s36, %s32
      %s95 = ssub.s32 %s93, %s94
      %p96 = scmp.eq.s32.totalorder %s95, 0
      %s98 = sadd.s32 %s97, 1
      %s99 = scalar_select %p96, %s97, %s98
      %p102 = pneg %p96
      %p103 = scmp.eq.s32.totalorder %s17, 1
      %p104 = por %p102, %p103
      %p105 = scmp.ne.s32.totalorder %s97, %s100
      %p106 = scmp.eq.s32.totalorder %s17, 0
      %p107 = por %p105, %p106
      %p108 = scmp.ne.s32.totalorder %s97, %s100
      %p109 = scmp.eq.s32.totalorder %s22, 1
      %p110 = por %p108, %p109
      %p111 = scmp.ne.s32.totalorder %s100, %s101
      %p112 = scmp.eq.s32.totalorder %s22, 0
      %p113 = por %p111, %p112
      %p114 = scmp.ne.s32.totalorder %s100, %s101
      %p115 = scmp.eq.s32.totalorder %s23, 1
      %p116 = por %p114, %p115
      %p118 = scmp.ne.s32.totalorder %s101, %s117
      %p119 = scmp.eq.s32.totalorder %s23, 0
      %p120 = por %p118, %p119
      %p121 = scmp.le.s32.totalorder 1, %s17
      %p122 = scmp.lt.s32.totalorder %s17, 3
      %p123 = pnand %p121, %p122
      %p124 = pneg %p123
      // Predicated region
      $region9: #{tpu_custom_call.1} parent=5 // pred_check
        _
      $region10: #{tpu_custom_call.1} parent=5 // pred_check_branch
        %126 = sbr.rel (%p123) target = $region12
      $region11: #{tpu_custom_call.1} parent=5 // pred_region
        %s127 = ssub.s32 %s17, 1
      $region12: #{tpu_custom_call.1} parent=5 // pred_fallthru
        _
      %p128 = scmp.lt.s32.totalorder %s17, 2
      // Predicated region
      $region13: #{tpu_custom_call.1} parent=5 // pred_check
        %p129 = pneg %p128
      $region14: #{tpu_custom_call.1} parent=5 // pred_check_branch
        %131 = sbr.rel (%p129) target = $region16
      $region15: #{tpu_custom_call.1} parent=5 // pred_region
        // Predicated region
        $region17: #{tpu_custom_call.1} parent=15 // pred_check
          %p132 = pneg %p51
        $region18: #{tpu_custom_call.1} parent=15 // pred_check_branch
          %134 = sbr.rel (%p132) target = $region20
        $region19: #{tpu_custom_call.1} parent=15 // pred_region
          %s135 = sand.u32 %s41, 1
          %s136 = scalar_lea.sflag [#allocation3], %s135
          %s137 = sand.u32 %s41, 1
          %s138 = smul.addr %s137, 64
          %s139 = scalar_lea.vmem [#allocation2], %s138
          %s140 = smul.u32 2, %s25
          %s142 = ssub.s32 1024, 1024
          %143 = vsyncadd %s136, %s142
          %s144 = smul.addr %s24, 8
          %s145 = sadd.s32 %s140, %s144
          %s146 = smul.addr %s145, 128
          %s147 = scalar_lea.hbm %s0, %s146
          %s148 = sshll.u32 %s139, 4
          %s149 = int_to_ptr.vmem [resolvable:$true] %s148
          %154 = dma.hbm_to_vmem [thread:$0]  %s147, 1024, %s149, %s136, 128, 128, 8
        $region20: #{tpu_custom_call.1} parent=15 // pred_fallthru
          _
        // Predicated region
        $region21: #{tpu_custom_call.1} parent=15 // pred_check
          %p155 = pneg %p79
        $region22: #{tpu_custom_call.1} parent=15 // pred_check_branch
          %157 = sbr.rel (%p155) target = $region24
        $region23: #{tpu_custom_call.1} parent=15 // pred_region
          %s158 = sand.u32 %s69, 1
          %s159 = scalar_lea.sflag [#allocation6], %s158
          %s160 = sand.u32 %s69, 1
          %s161 = smul.addr %s160, 16
          %s162 = scalar_lea.vmem [#allocation5], %s161
          %s163 = smul.u32 2, %s25
          %s165 = ssub.s32 256, 256
          %166 = vsyncadd %s159, %s165
          %s167 = smul.addr %s24, 2
          %s168 = sadd.s32 %s163, %s167
          %s169 = smul.addr %s168, 128
          %s170 = scalar_lea.hbm %s1, %s169
          %s171 = sshll.u32 %s162, 4
          %s172 = int_to_ptr.vmem [resolvable:$true] %s171
          %177 = dma.hbm_to_vmem [thread:$0]  %s170, 256, %s172, %s159, 128, 128, 8
        $region24: #{tpu_custom_call.1} parent=15 // pred_fallthru
          _
      $region16: #{tpu_custom_call.1} parent=5 // pred_fallthru
        _
      %p178 = scmp.le.s32.totalorder 1, %s17
      %p179 = scmp.lt.s32.totalorder %s17, 3
      %p180 = pnand %p178, %p179
      %p181 = pneg %p180
      // Predicated region
      $region25: #{tpu_custom_call.1} parent=5 // pred_check
        _
      $region26: #{tpu_custom_call.1} parent=5 // pred_check_branch
        %183 = sbr.rel (%p180) target = $region28
      $region27: #{tpu_custom_call.1} parent=5 // pred_region
        %s184 = ssub.s32 %s17, 1
        %s185 = sand.u32 %s44, 1
        %s186 = scalar_lea.sflag [#allocation3], %s185
        %s187 = sand.u32 %s44, 1
        %s188 = smul.addr %s187, 64
        %s189 = scalar_lea.vmem [#allocation2], %s188
        // Predicated region
        $region29: #{tpu_custom_call.1} parent=27 // pred_check
          %p190 = pneg %p57
        $region30: #{tpu_custom_call.1} parent=27 // pred_check_branch
          %192 = sbr.rel (%p190) target = $region32
        $region31: #{tpu_custom_call.1} parent=27 // pred_region
          %193 = dma.done %s186, 1024
        $region32: #{tpu_custom_call.1} parent=27 // pred_fallthru
          _
        %s194 = sand.u32 %s72, 1
        %s195 = scalar_lea.sflag [#allocation6], %s194
        %s196 = sand.u32 %s72, 1
        %s197 = smul.addr %s196, 16
        %s198 = scalar_lea.vmem [#allocation5], %s197
        // Predicated region
        $region33: #{tpu_custom_call.1} parent=27 // pred_check
          %p199 = pneg %p85
        $region34: #{tpu_custom_call.1} parent=27 // pred_check_branch
          %201 = sbr.rel (%p199) target = $region36
        $region35: #{tpu_custom_call.1} parent=27 // pred_region
          %202 = dma.done %s195, 256
        $region36: #{tpu_custom_call.1} parent=27 // pred_fallthru
          _
        %s203 = sand.u32 %s44, 1
        %s204 = scalar_lea.sflag [#allocation3], %s203
        %s205 = sand.u32 %s44, 1
        %s206 = smul.addr %s205, 64
        %s207 = scalar_lea.vmem [#allocation2], %s206
        %p208 = pneg %p57
        %p209 = pneg %p54
        %s210 = sand.u32 %s72, 1
        %s211 = scalar_lea.sflag [#allocation6], %s210
        %s212 = sand.u32 %s72, 1
        %s213 = smul.addr %s212, 16
        %s214 = scalar_lea.vmem [#allocation5], %s213
        %p215 = pneg %p85
        %p216 = pneg %p82
        %p217 = pneg %p113
        %p218 = pneg %p110
        %s219 = sand.u32 %s100, 1
        %s220 = scalar_lea.sflag [#allocation4], %s219
        %s221 = sand.u32 %s100, 1
        %s222 = smul.addr %s221, 2
        %s223 = scalar_lea.vmem [#allocation7], %s222
        %s224 = smul.u32 2, %s27
        %s225 = smul.u32 2, %s27
        %s226 = sadd.s32 %s26, %s27
        %v227 = vld [vmem:[%s198] sm:$0xff]
        %v228 = vld [vmem:[%s198 + $0x8] sm:$0xff]
        %vm229 = vcmp.eq.s32.totalorder %v227, 4294967196
        %vm230 = vcmp.eq.s32.totalorder %v228, 4294967196
        %vm231 = vmxor %vm229, 1
        %vm232 = vmxor %vm230, 1
        %v233 = vld [vmem:[%s189] sm:$0xff]
        %v234 = vld [vmem:[%s189 + $0x8] sm:$0xff]
        %s235 = scalar_lea.vmem %s189, 16 [#allocation2]
        %v236 = vld [vmem:[%s235] sm:$0xff]
        %v237 = vld [vmem:[%s235 + $0x8] sm:$0xff]
        %v238 = vmax.f32 %v233, %v236
        %v239 = vmax.f32 %v234, %v237
        %s240 = scalar_lea.vmem %s189, 32 [#allocation2]
        %v241 = vld [vmem:[%s240] sm:$0xff]
        %v242 = vld [vmem:[%s240 + $0x8] sm:$0xff]
        %v243 = vmax.f32 %v238, %v241
        %v244 = vmax.f32 %v239, %v242
        %s245 = scalar_lea.vmem %s189, 48 [#allocation2]
        %v246 = vld [vmem:[%s245] sm:$0xff]
        %v247 = vld [vmem:[%s245 + $0x8] sm:$0xff]
        %v248 = vmax.f32 %v243, %v246
        %v249 = vmax.f32 %v244, %v247
        %v250 = vsub.f32 %v233, %v248
        %v251 = vsub.f32 %v234, %v249
        %v252 = vmul.f32 %v250, 1.442695
        %v253 = vpow.pop %v252
        %v254 = vmul.f32 %v251, 1.442695
        %v255 = vpow.pop %v254
        %v256 = vadd.f32 %v253, 0.0
        %v257 = vadd.f32 %v255, 0.0
        %v258 = vadd.f32 %v250, 0.0
        %v259 = vadd.f32 %v251, 0.0
        %vm260 = vcmp.eq.s32.totalorder %v227, 0
        %vm261 = vcmp.eq.s32.totalorder %v228, 0
        %v262 = vsel %vm260, %v250, 0.0
        %v263 = vsel %vm261, %v251, 0.0
        %v264 = vadd.f32 %v262, 0.0
        %v265 = vadd.f32 %v263, 0.0
        %v266 = vsub.f32 %v236, %v248
        %v267 = vsub.f32 %v237, %v249
        %v268 = vmul.f32 %v266, 1.442695
        %v269 = vpow.pop %v268
        %v270 = vmul.f32 %v267, 1.442695
        %v271 = vpow.pop %v270
        %v272 = vadd.f32 %v256, %v269
        %v273 = vadd.f32 %v257, %v271
        %v274 = vadd.f32 %v258, %v266
        %v275 = vadd.f32 %v259, %v267
        %vm276 = vcmp.eq.s32.totalorder %v227, 1
        %vm277 = vcmp.eq.s32.totalorder %v228, 1
        %v278 = vsel %vm276, %v266, 0.0
        %v279 = vsel %vm277, %v267, 0.0
        %v280 = vadd.f32 %v264, %v278
        %v281 = vadd.f32 %v265, %v279
        %v282 = vsub.f32 %v241, %v248
        %v283 = vsub.f32 %v242, %v249
        %v284 = vmul.f32 %v282, 1.442695
        %v285 = vpow.pop %v284
        %v286 = vmul.f32 %v283, 1.442695
        %v287 = vpow.pop %v286
        %v288 = vadd.f32 %v272, %v285
        %v289 = vadd.f32 %v273, %v287
        %v290 = vadd.f32 %v274, %v282
        %v291 = vadd.f32 %v275, %v283
        %vm292 = vcmp.eq.s32.totalorder %v227, 2
        %vm293 = vcmp.eq.s32.totalorder %v228, 2
        %v294 = vsel %vm292, %v282, 0.0
        %v295 = vsel %vm293, %v283, 0.0
        %v296 = vadd.f32 %v280, %v294
        %v297 = vadd.f32 %v281, %v295
        %v298 = vsub.f32 %v246, %v248
        %v299 = vsub.f32 %v247, %v249
        %v300 = vmul.f32 %v298, 1.442695
        %v301 = vpow.pop %v300
        %v302 = vmul.f32 %v299, 1.442695
        %v303 = vpow.pop %v302
        %v304 = vadd.f32 %v288, %v301
        %v305 = vadd.f32 %v289, %v303
        %v306 = vadd.f32 %v290, %v298
        %v307 = vadd.f32 %v291, %v299
        %vm308 = vcmp.eq.s32.totalorder %v227, 3
        %vm309 = vcmp.eq.s32.totalorder %v228, 3
        %v310 = vsel %vm308, %v298, 0.0
        %v311 = vsel %vm309, %v299, 0.0
        %v312 = vadd.f32 %v296, %v310
        %v313 = vadd.f32 %v297, %v311
        %v314 = vlog2.pop %v304
        %v315 = vmul.f32 %v314, 0.6931472
        %v316 = vlog2.pop %v305
        %v317 = vmul.f32 %v316, 0.6931472
        %v318 = vmul.f32 %v315, 4.0
        %v319 = vmul.f32 %v317, 4.0
        %v320 = vsub.f32 %v306, %v318
        %v321 = vsub.f32 %v307, %v319
        %v322 = vmul.f32 %v320, 0.0025
        %v323 = vmul.f32 %v321, 0.0025
        %v324 = vsub.f32 %v312, %v315
        %v325 = vsub.f32 %v313, %v317
        %v326 = vmul.f32 %v324, 0.9875
        %v327 = vmul.f32 %v325, 0.9875
        %v328 = vadd.f32 %v322, %v326
        %v329 = vadd.f32 %v323, %v327
        %v330 = vsub.f32 0.0, %v328
        %v331 = vsub.f32 0.0, %v329
        %v332 = vsel %vm231, %v330, 0.0
        %v333 = vsel %vm232, %v331, 0.0
        %vm334 = vcmask 130048
        %v335 = vsel %vm334, %v332, 0.0
        %336 = vadd.xlane.f32.xlu0 %v335
        %v337 = vpop.xlane.xlu0 %336
        %v338 = vsel %vm334, %v333, 0.0
        %339 = vadd.xlane.f32.xlu0 %v338
        %v340 = vpop.xlane.xlu0 %339
        %v341 = vadd.f32 %v337, %v340
        %v342 = vrot.slane %v341, 4
        %v343 = vadd.f32 %v341, %v342
        %v344 = vrot.slane %v343, 2
        %v345 = vadd.f32 %v343, %v344
        %v346 = vrot.slane %v345, 1
        %v347 = vadd.f32 %v345, %v346
        %v348 = vsel %vm231, 1, 0
        %v349 = vsel %vm232, 1, 0
        %v350 = vcvt.s32.f32 %v348
        %v351 = vcvt.s32.f32 %v349
        %v352 = vsel %vm334, %v350, 0.0
        %353 = vadd.xlane.f32.xlu0 %v352
        %v354 = vpop.xlane.xlu0 %353
        %v355 = vsel %vm334, %v351, 0.0
        %356 = vadd.xlane.f32.xlu0 %v355
        %v357 = vpop.xlane.xlu0 %356
        %v358 = vadd.f32 %v354, %v357
        %v359 = vrot.slane %v358, 4
        %v360 = vadd.f32 %v358, %v359
        %v361 = vrot.slane %v360, 2
        %v362 = vadd.f32 %v360, %v361
        %v363 = vrot.slane %v362, 1
        %v364 = vadd.f32 %v362, %v363
        %v365 = vlaneseq
        %v366 = vshrl.u32 %v365, 7
        %vm367 = vcmp.eq.s32.totalorder %v366, 0
        %v368 = vsel %vm367, %v347, %v364
        %369 = vst [vmem:[%s223] sm:$0x3] %v368
        %s370 = sand.u32 %s100, 1
        %s371 = scalar_lea.sflag [#allocation4], %s370
        %s372 = sand.u32 %s100, 1
        %s373 = smul.addr %s372, 2
        %s374 = scalar_lea.vmem [#allocation7], %s373
        // Predicated region
        $region37: #{tpu_custom_call.1} parent=27 // pred_check
          %p375 = pneg %p110
        $region38: #{tpu_custom_call.1} parent=27 // pred_check_branch
          %377 = sbr.rel (%p375) target = $region40
        $region39: #{tpu_custom_call.1} parent=27 // pred_region
          %s378 = sadd.s32 %s26, %s27
          %s380 = ssub.s32 32, 32
          %381 = vsyncadd %s371, %s380
          %s382 = smul.addr %s378, 32
          %s383 = scalar_lea.hbm %s2, %s382
          %s385 = sshll.u32 %s374, 4
          %s386 = int_to_ptr.vmem [resolvable:$true] %s385
          %388 = dma.vmem_to_hbm [thread:$0]  %s386, 32, %s383, %s371
        $region40: #{tpu_custom_call.1} parent=27 // pred_fallthru
          _
      $region28: #{tpu_custom_call.1} parent=5 // pred_fallthru
        _
      %p389 = scmp.le.s32.totalorder 2, %s17
      // Predicated region
      $region41: #{tpu_custom_call.1} parent=5 // pred_check
        %p390 = pneg %p389
      $region42: #{tpu_custom_call.1} parent=5 // pred_check_branch
        %392 = sbr.rel (%p390) target = $region44
      $region43: #{tpu_custom_call.1} parent=5 // pred_region
        %s393 = ssub.s32 %s17, 2
        // Predicated region
        $region45: #{tpu_custom_call.1} parent=43 // pred_check
          %p394 = pneg %p116
        $region46: #{tpu_custom_call.1} parent=43 // pred_check_branch
          %396 = sbr.rel (%p394) target = $region48
        $region47: #{tpu_custom_call.1} parent=43 // pred_region
          %s397 = sand.u32 %s101, 1
          %s398 = scalar_lea.sflag [#allocation4], %s397
          %s399 = sand.u32 %s101, 1
          %s400 = smul.addr %s399, 2
          %s401 = scalar_lea.vmem [#allocation7], %s400
          %402 = dma.done %s398, 32
        $region48: #{tpu_custom_call.1} parent=43 // pred_fallthru
          _
      $region44: #{tpu_custom_call.1} parent=5 // pred_fallthru
        _
    $region6: #{tpu_custom_call.1} parent=1 // loop_footer
      %s21 = sadd.s32 1, %s17
    $region7: #{tpu_custom_call.1} parent=1 // loop_footer_branch
      %16 = sbr.rel target = $region3
    $region8: #{tpu_custom_call.1} parent=1 // loop_exit
      _
    %403 = vsyncpa [#allocation3], 1
    %s404 = scalar_lea.sflag [#allocation3], 1
    %405 = vsyncpa %s404, 1
    %406 = vsyncpa [#allocation6], 1
    %s407 = scalar_lea.sflag [#allocation6], 1
    %408 = vsyncpa %s407, 1
    %409 = vsyncpa [#allocation4], 1
    %s410 = scalar_lea.sflag [#allocation4], 1
    %411 = vsyncpa %s410, 1

</llo_original>
